<compile_context>
chip_gen: v7x
topology: tpu7x:2x2x1
jax: 0.10.0
libtpu: 0.0.40
codegen_flags: <defaults>
</compile_context>

<pallas_src>
import math
import jax
import jax.numpy as jnp
from jax.experimental import pallas as pl
from jax.experimental.pallas import tpu as pltpu

IN_FEATURES = 32
OUT_FEATURES = 32
# default: in*out // (in+out)  ->  32*32 // 64 = 16
PROJ_FEATURES = IN_FEATURES * OUT_FEATURES // (IN_FEATURES + OUT_FEATURES)


# ---------------------------------------------------------------------------
# Pallas kernel: one matmul against the pre-folded (block-diagonal) effective
# weight, plus bias.  Pure load / MXU / store — all elementwise prep (gate,
# sigmoid, weight folding, bias tiling, dtype casts) lives in the wrapper.
# ---------------------------------------------------------------------------
def _fused_linear_kernel(x_ref, w_ref, b_ref, o_ref):
    u = jnp.dot(x_ref[...], w_ref[...], preferred_element_type=jnp.float32)
    o_ref[...] = (u + b_ref[...]).astype(o_ref.dtype)


def hard_concrete_mask(log_alpha, limit_l=-0.1, limit_r=1.1):
    """Deterministic (expected-value / eval-style) hard-concrete gate."""
    s = jax.nn.sigmoid(log_alpha)
    s = s * (limit_r - limit_l) + limit_l
    return jnp.clip(s, 0.0, 1.0)


def _choose_pack(in_f, out_f, target_lanes=256):
    """Pick how many logical rows to pack per physical row so that both the
    packed input width and packed output width are lane-dense (multiples of
    128).  256 lanes feeds the full 256x256 MXU on v6e/v7x; on v5e it simply
    becomes multiple 128^2 passes (still fully hidden under DMA)."""
    for lanes in (target_lanes, 128):
        if lanes % in_f == 0 and lanes % out_f == 0:
            pack = min(lanes // in_f, lanes // out_f)
            if (pack * in_f) % 128 == 0 and (pack * out_f) % 128 == 0:
                return pack
    return 1


def hard_concrete_projected_linear(data, weight, weight_proj, log_alpha, bias,
                                   *, tm=4096, compute_dtype=jnp.bfloat16):
    """data: [..., in_features] -> [..., out_features]."""
    in_f, proj_f = weight.shape
    out_f = weight_proj.shape[1]
    assert tm % 8 == 0, "row tile must be sublane-aligned (multiple of 8)"

    lead = data.shape[:-1]
    m = math.prod(lead) if lead else 1
    x = data.reshape(m, in_f)

    if bias is None:
        bias = jnp.zeros((out_f,), jnp.float32)

    # ---- one-time wrapper-side folding (tiny, runs once per call) --------
    mask = hard_concrete_mask(log_alpha)
    w_eff = weight @ (weight_proj * mask[:, None])          # (in_f, out_f)

    # ---- lane-dense packing: `pack` logical rows per physical row --------
    pack = _choose_pack(in_f, out_f)
    rows = -(-m // pack)                       # ceil(m / pack)
    m_pad = rows * pack
    if m_pad != m:
        # single pad, only when M isn't pack-aligned; the bf16 convert below
        # fuses into this same copy.
        x = jnp.pad(x, ((0, m_pad - m), (0, 0)))
    xp = x.reshape(rows, pack * in_f)

    if pack > 1:
        w_block = jax.scipy.linalg.block_diag(*([w_eff] * pack))
        b_block = jnp.tile(bias, pack).reshape(1, pack * out_f)
    else:
        w_block = w_eff
        b_block = bias.reshape(1, out_f)

    # bf16 streamed operands: halves HBM traffic on the dominant x stream and
    # uses the native bf16 MXU path; accumulation stays f32 inside the dot.
    xp = xp.astype(compute_dtype)
    w_block = w_block.astype(compute_dtype)
    b_block = b_block.astype(jnp.float32)

    pk_in = pack * in_f
    pk_out = pack * out_f

    # ---- row tiling -------------------------------------------------------
    #  * as large as possible (amortize the ~0.35 us per-grid-step overhead),
    #  * but keep >= 2 grid steps when rows allow, so v7x's two TensorCores
    #    both run via dimension_semantics=("parallel",),
    #  * no padding: Pallas masks the ragged last block (rows independent).
    if rows <= 8:
        tm_eff = rows                         # single full-extent block
    else:
        half = -(-rows // 2)
        half = -(-half // 8) * 8              # sublane-aligned
        tm_eff = max(8, min(tm, half))
    grid = (pl.cdiv(rows, tm_eff),)

    x_isize = jnp.dtype(compute_dtype).itemsize
    out_dtype = data.dtype
    o_isize = jnp.dtype(out_dtype).itemsize

    # NOTE: if an xprof trace ever shows exposed DMA at steady state on v7x,
    # add pipeline_mode=pl.Buffered(3) to the x BlockSpec below.
    out = pl.pallas_call(
        _fused_linear_kernel,
        out_shape=jax.ShapeDtypeStruct((rows, pk_out), out_dtype),
        grid_spec=pl.GridSpec(
            grid=grid,
            in_specs=[
                pl.BlockSpec((tm_eff, pk_in), lambda i: (i, 0)),
                pl.BlockSpec((pk_in, pk_out), lambda i: (0, 0)),  # resident
                pl.BlockSpec((1, pk_out), lambda i: (0, 0)),      # resident
            ],
            out_specs=pl.BlockSpec((tm_eff, pk_out), lambda i: (i, 0)),
        ),
        compiler_params=pltpu.CompilerParams(
            dimension_semantics=("parallel",),
            vmem_limit_bytes=32 * 1024 * 1024),
        cost_estimate=pl.CostEstimate(
            flops=2 * rows * pk_in * pk_out,
            transcendentals=0,
            bytes_accessed=(rows * pk_in * x_isize
                            + rows * pk_out * o_isize
                            + pk_in * pk_out * x_isize
                            + pk_out * 4)),
    )(xp, w_block, b_block)

    # unpack lane-dense rows, drop pack padding, restore leading dims
    out = out.reshape(rows * pack, out_f)
    if m_pad != m:
        out = out[:m]
    return out.reshape(lead + (out_f,))


# ---------------------------------------------------------------------------
# Deterministic parameter initialization (mirrors reset_parameters()).
# ---------------------------------------------------------------------------
def init_params(key, in_features, out_features, proj_features,
                init_mean=0.5, init_std=0.01):
    k_w1, k_w2, k_b, k_la = jax.random.split(key, 4)

    # xavier_uniform_ on weight [in, proj]
    bound1 = math.sqrt(6.0 / (in_features + proj_features))
    weight = jax.random.uniform(k_w1, (in_features, proj_features),
                                jnp.float32, -bound1, bound1)

    # xavier_uniform_ on weight_proj [proj, out]
    bound2 = math.sqrt(6.0 / (proj_features + out_features))
    weight_proj = jax.random.uniform(k_w2, (proj_features, out_features),
                                     jnp.float32, -bound2, bound2)

    # bias: uniform(-1/sqrt(fan_in), 1/sqrt(fan_in)), fan_in = weight.shape[1]
    bbound = 1.0 / math.sqrt(proj_features)
    bias = jax.random.uniform(k_b, (out_features,), jnp.float32,
                              -bbound, bbound)

    # HardConcrete log_alpha ~ Normal(logit(init_mean), init_std)
    loc = math.log(init_mean) - math.log(1.0 - init_mean)  # 0.0 for 0.5
    log_alpha = loc + init_std * jax.random.normal(k_la, (proj_features,),
                                                   jnp.float32)
    return weight, weight_proj, log_alpha, bias


if __name__ == "__main__":
    key = jax.random.PRNGKey(0)
    k_params, k_data, k_data2 = jax.random.split(key, 3)

    weight, weight_proj, log_alpha, bias = init_params(
        k_params, IN_FEATURES, OUT_FEATURES, PROJ_FEATURES)

    mask_ref = hard_concrete_mask(log_alpha)
    w_eff_ref = weight @ (weight_proj * mask_ref[:, None])

    def check(data):
        out = jax.block_until_ready(
            hard_concrete_projected_linear(data, weight, weight_proj,
                                           log_alpha, bias))
        assert out.shape == data.shape[:-1] + (OUT_FEATURES,)
        # bf16-streamed reference (same folded math as the kernel): tight tol
        x2 = data.reshape(-1, IN_FEATURES).astype(jnp.bfloat16)
        ref_bf16 = (jnp.dot(x2, w_eff_ref.astype(jnp.bfloat16),
                            preferred_element_type=jnp.float32)
                    + bias).reshape(out.shape)
        assert jnp.allclose(out, ref_bf16, atol=2e-3, rtol=2e-3)
        # full-f32 reference of the original (un-folded) op order: loose tol
        # accounts for the bf16 streamed operands.
        ref_f32 = data @ weight @ (weight_proj * mask_ref[:, None]) + bias
        assert jnp.allclose(out, ref_f32, atol=5e-2, rtol=5e-2)

    # small input: [batch=2, seq=8, in_features=32]   (M = 16, single block)
    check(jax.random.normal(k_data, (2, 8, IN_FEATURES), jnp.float32))
    # ragged-M / multi-grid-step path: M = 3*37 = 111 (pack pad + masked edge)
    check(jax.random.normal(k_data2, (3, 37, IN_FEATURES), jnp.float32))

    print("KERNEL_OK")
</pallas_src>

<mosaic_0001>
module attributes {stable_mosaic.version = 11 : i64} {
  func.func @_fused_linear_kernel(%arg0: i32, %arg1: memref<2x256xbf16, #tpu.memory_space<vmem>>, %arg2: memref<256x256xbf16, #tpu.memory_space<vmem>>, %arg3: memref<1x256xf32, #tpu.memory_space<vmem>>, %arg4: memref<2x256xf32, #tpu.memory_space<vmem>>) attributes {dimension_semantics = [#tpu.dimension_semantics<parallel>], iteration_bounds = array<i64: 1>, scalar_prefetch = 0 : i64, scratch_operands = 0 : i64, tpu.core_type = #tpu.core_type<tc>, window_params = [{transform_indices = @transform_0, window_bounds = array<i64: 2, 256>}, {pipeline_mode = #tpu.pipeline_mode<synchronous>, transform_indices = @transform_1, window_bounds = array<i64: 256, 256>}, {pipeline_mode = #tpu.pipeline_mode<synchronous>, transform_indices = @transform_2, window_bounds = array<i64: 1, 256>}, {transform_indices = @transform_3, window_bounds = array<i64: 2, 256>}]} {
    %c0 = arith.constant 0 : index
    %c0_0 = arith.constant 0 : index
    %0 = vector.load %arg1[%c0, %c0_0] : memref<2x256xbf16, #tpu.memory_space<vmem>>, vector<2x256xbf16>
    %c0_1 = arith.constant 0 : index
    %c0_2 = arith.constant 0 : index
    %1 = vector.load %arg2[%c0_1, %c0_2] : memref<256x256xbf16, #tpu.memory_space<vmem>>, vector<256x256xbf16>
    %cst = arith.constant dense<0.000000e+00> : vector<2x256xf32>
    %2 = tpu.matmul %0, %1, %cst {dimension_numbers = #tpu.dot_dimension_numbers<[1], [0], [0], [1], [0, 0, 1, 1], [], []>} : vector<2x256xbf16>, vector<256x256xbf16>, vector<2x256xf32> -> vector<2x256xf32>
    %c0_3 = arith.constant 0 : index
    %c0_4 = arith.constant 0 : index
    %3 = vector.load %arg3[%c0_3, %c0_4] : memref<1x256xf32, #tpu.memory_space<vmem>>, vector<1x256xf32>
    %4 = vector.broadcast %3 : vector<1x256xf32> to vector<2x256xf32>
    %5 = arith.addf %2, %4 : vector<2x256xf32>
    %c0_5 = arith.constant 0 : index
    %c0_6 = arith.constant 0 : index
    %6 = vector.load %arg4[%c0_5, %c0_6] : memref<2x256xf32, #tpu.memory_space<vmem>>, vector<2x256xf32>
    tpu.vector_store %arg4[%c0_5, %c0_6], %5 {strides = array<i32>} : memref<2x256xf32, #tpu.memory_space<vmem>>, vector<2x256xf32>,
    return
  }
  func.func @transform_0(%arg0: i32) -> (i32, i32) {
    %c0_i32 = arith.constant 0 : i32
    %c0_i32_0 = arith.constant 0 : i32
    return %arg0, %c0_i32 : i32, i32
  }
  func.func @transform_1(%arg0: i32) -> (i32, i32) {
    %c0_i32 = arith.constant 0 : i32
    %c0_i32_0 = arith.constant 0 : i32
    %c0_i32_1 = arith.constant 0 : i32
    return %c0_i32, %c0_i32_0 : i32, i32
  }
  func.func @transform_2(%arg0: i32) -> (i32, i32) {
    %c0_i32 = arith.constant 0 : i32
    %c0_i32_0 = arith.constant 0 : i32
    %c0_i32_1 = arith.constant 0 : i32
    return %c0_i32, %c0_i32_0 : i32, i32
  }
  func.func @transform_3(%arg0: i32) -> (i32, i32) {
    %c0_i32 = arith.constant 0 : i32
    %c0_i32_0 = arith.constant 0 : i32
    return %arg0, %c0_i32 : i32, i32
  }
}

</mosaic_0001>

<llo_original>
// kernel: tpu_custom_call.1
$region0: #{tpu_custom_call.1}
  #allocation0 [shape = 'u32[]', space=smem, size = 0x4, offset = 0x4, fixed_abs, tag = 'smem constant byte address 0x4 - core index']
  #allocation1 [shape = 'u32[144,128]{1,0:T(1,128)}', space=vmem, size = 0x12000, scoped, tag = 'internal scratch']
  %s0 = inlined_call_operand.hbm [shape: bf16[2,256], index: 0, kind: input, shape index: {}]
  %s1 = inlined_call_operand.hbm [shape: bf16[256,256], index: 1, kind: input, shape index: {}]
  %s2 = inlined_call_operand.vmem [shape: f32[1,256], index: 2, kind: input, shape index: {}]
  %s3 = inlined_call_operand.hbm [shape: f32[2,256], index: 3, kind: output, shape index: {}]
  %s4 = sld [smem:[#allocation0]]
  $region30: #{tpu_custom_call.1} parent=0
    _
  %s6 = ssub.s32 1, %s4
  %s7 = scalar_select 0, %s6, %s4
  $region1: #{tpu_custom_call.1} parent=0
    #allocation2 [shape = 'u8[1024]{0}', space=vmem, size = 0x400, scoped, tag = 'input window, operand 0, single buffered']
    #allocation3 [shape = 's32[1]{0}', space=sflag, size = 0x4, scoped, tag = 'scoped memory for tpu_custom_call.1']
    #allocation4 [shape = 's32[1]{0}', space=sflag, size = 0x4, scoped, tag = 'scoped memory for tpu_custom_call.1']
    #allocation5 [shape = 'u8[131072]{0}', space=vmem, size = 0x20000, scoped, tag = 'input window, operand 1, single buffered']
    #allocation6 [shape = 's32[1]{0}', space=sflag, size = 0x4, scoped, tag = 'scoped memory for tpu_custom_call.1']
    #allocation7 [shape = 'u8[2048]{0}', space=vmem, size = 0x800, scoped, tag = 'output window, operand 0, single buffered']
    %8 = vsyncpa [#allocation3], 0
    %9 = vsyncpa [#allocation6], 0
    %10 = vsyncpa [#allocation4], 0
    // Predicated region
    $region2: #{tpu_custom_call.1} parent=1 // pred_check
      _
    $region3: #{tpu_custom_call.1} parent=1 // pred_check_branch
      %12 = sbr.rel (0) target = $region5
    $region4: #{tpu_custom_call.1} parent=1 // pred_region
      %s14 = ssub.s32 32, 32
      %15 = vsyncadd [#allocation3], %s14
      %s17 = sshll.u32 [#allocation2], 4
      %s18 = int_to_ptr.vmem [resolvable:$true] %s17
      %20 = dma.hbm_to_vmem [thread:$0]  %s0, 32, %s18, [#allocation3]
    $region5: #{tpu_custom_call.1} parent=1 // pred_fallthru
      _
    // Predicated region
    $region6: #{tpu_custom_call.1} parent=1 // pred_check
      _
    $region7: #{tpu_custom_call.1} parent=1 // pred_check_branch
      %22 = sbr.rel (0) target = $region9
    $region8: #{tpu_custom_call.1} parent=1 // pred_region
      %s24 = ssub.s32 4096, 4096
      %25 = vsyncadd [#allocation6], %s24
      %s26 = sshll.u32 [#allocation5], 4
      %s27 = int_to_ptr.vmem [resolvable:$true] %s26
      %32 = dma.hbm_to_vmem [thread:$0]  %s1, 4096, %s27, [#allocation6], 128, 128, 8
    $region9: #{tpu_custom_call.1} parent=1 // pred_fallthru
      _
    // Predicated region
    $region10: #{tpu_custom_call.1} parent=1 // pred_check
      _
    $region11: #{tpu_custom_call.1} parent=1 // pred_check_branch
      %34 = sbr.rel (0) target = $region13
    $region12: #{tpu_custom_call.1} parent=1 // pred_region
      _
    $region13: #{tpu_custom_call.1} parent=1 // pred_fallthru
      _
    // Predicated region
    $region14: #{tpu_custom_call.1} parent=1 // pred_check
      _
    $region15: #{tpu_custom_call.1} parent=1 // pred_check_branch
      %36 = sbr.rel (0) target = $region17
    $region16: #{tpu_custom_call.1} parent=1 // pred_region
      %37 = dma.done [#allocation3], 32
    $region17: #{tpu_custom_call.1} parent=1 // pred_fallthru
      _
    // Predicated region
    $region18: #{tpu_custom_call.1} parent=1 // pred_check
      _
    $region19: #{tpu_custom_call.1} parent=1 // pred_check_branch
      %39 = sbr.rel (0) target = $region21
    $region20: #{tpu_custom_call.1} parent=1 // pred_region
      %40 = dma.done [#allocation6], 4096
    $region21: #{tpu_custom_call.1} parent=1 // pred_fallthru
      _
    %v41 = vld [vmem:[#allocation2] sm:$0x3]
    %v42 = vld [vmem:[#allocation5] sm:$0xff]
    %v43 = vld [vmem:[#allocation5 + $0x8] sm:$0xff]
    %v44 = vld [vmem:[#allocation5 + $0x10] sm:$0xff]
    %v45 = vld [vmem:[#allocation5 + $0x18] sm:$0xff]
    %v46 = vld [vmem:[#allocation5 + $0x20] sm:$0xff]
    %v47 = vld [vmem:[#allocation5 + $0x28] sm:$0xff]
    %v48 = vld [vmem:[#allocation5 + $0x30] sm:$0xff]
    %v49 = vld [vmem:[#allocation5 + $0x38] sm:$0xff]
    %v50 = vld [vmem:[#allocation5 + $0x40] sm:$0xff]
    %v51 = vld [vmem:[#allocation5 + $0x48] sm:$0xff]
    %v52 = vld [vmem:[#allocation5 + $0x50] sm:$0xff]
    %v53 = vld [vmem:[#allocation5 + $0x58] sm:$0xff]
    %v54 = vld [vmem:[#allocation5 + $0x60] sm:$0xff]
    %v55 = vld [vmem:[#allocation5 + $0x68] sm:$0xff]
    %v56 = vld [vmem:[#allocation5 + $0x70] sm:$0xff]
    %v57 = vld [vmem:[#allocation5 + $0x78] sm:$0xff]
    %v58 = vld [vmem:[#allocation5 + $0x80] sm:$0xff]
    %v59 = vld [vmem:[#allocation5 + $0x88] sm:$0xff]
    %v60 = vld [vmem:[#allocation5 + $0x90] sm:$0xff]
    %v61 = vld [vmem:[#allocation5 + $0x98] sm:$0xff]
    %v62 = vld [vmem:[#allocation5 + $0xa0] sm:$0xff]
    %v63 = vld [vmem:[#allocation5 + $0xa8] sm:$0xff]
    %v64 = vld [vmem:[#allocation5 + $0xb0] sm:$0xff]
    %v65 = vld [vmem:[#allocation5 + $0xb8] sm:$0xff]
    %v66 = vld [vmem:[#allocation5 + $0xc0] sm:$0xff]
    %v67 = vld [vmem:[#allocation5 + $0xc8] sm:$0xff]
    %v68 = vld [vmem:[#allocation5 + $0xd0] sm:$0xff]
    %v69 = vld [vmem:[#allocation5 + $0xd8] sm:$0xff]
    %v70 = vld [vmem:[#allocation5 + $0xe0] sm:$0xff]
    %v71 = vld [vmem:[#allocation5 + $0xe8] sm:$0xff]
    %v72 = vld [vmem:[#allocation5 + $0xf0] sm:$0xff]
    %v73 = vld [vmem:[#allocation5 + $0xf8] sm:$0xff]
    %v74 = vld [vmem:[%s2] sm:$0x3]
    %v76 = vlaneseq
    %v77 = vshrl.u32 %v76, 7
    %v78 = vsub.s32 0, %v77
    %v79 = vrot.slane %v74, %v78
    %v80 = vlaneseq
    %v81 = vshrl.u32 %v80, 7
    %v82 = vsub.s32 1, %v81
    %v83 = vrot.slane %v74, %v82
    %v88 = vunpack.c.l.s4 1966171168
    %v89 = vunpack.c.0.s8 %v88
    %v90 = vlaneseq
    %v91 = vshrl.u32 %v90, 7
    %v92 = vsub.s32 %v89, %v91
    %v93 = vrot.slane %v41, %v92
    %v94 = vcombine.high %v93, %v93
    %v96 = vunpack.c.l.s4 1966171168
    %v97 = vunpack.c.0.s8 %v96
    %v98 = vlaneseq
    %v99 = vshrl.u32 %v98, 7
    %v100 = vsub.s32 %v97, %v99
    %v101 = vrot.slane %v93, %v100
    %v103 = vunpack.c.l.s4 1966171168
    %v104 = vunpack.c.0.s8 %v103
    %v105 = vlaneseq
    %v106 = vshrl.u32 %v105, 7
    %v107 = vsub.s32 %v104, %v106
    %v108 = vrot.slane %v94, %v107
    %v143 = vunpack.c.l.b16 %v42
    %v144 = vunpack.c.h.b16 %v42
    %v145 = vunpack.c.l.b16 %v43
    %v146 = vunpack.c.h.b16 %v43
    %v147 = vunpack.c.l.b16 %v44
    %v148 = vunpack.c.h.b16 %v44
    %v149 = vunpack.c.l.b16 %v45
    %v150 = vunpack.c.h.b16 %v45
    %v151 = vunpack.c.l.b16 %v46
    %v152 = vunpack.c.h.b16 %v46
    %v153 = vunpack.c.l.b16 %v47
    %v154 = vunpack.c.h.b16 %v47
    %v155 = vunpack.c.l.b16 %v48
    %v156 = vunpack.c.h.b16 %v48
    %v157 = vunpack.c.l.b16 %v49
    %v158 = vunpack.c.h.b16 %v49
    %v159 = vunpack.c.l.b16 %v50
    %v160 = vunpack.c.h.b16 %v50
    %v161 = vunpack.c.l.b16 %v51
    %v162 = vunpack.c.h.b16 %v51
    %v163 = vunpack.c.l.b16 %v52
    %v164 = vunpack.c.h.b16 %v52
    %v165 = vunpack.c.l.b16 %v53
    %v166 = vunpack.c.h.b16 %v53
    %v167 = vunpack.c.l.b16 %v54
    %v168 = vunpack.c.h.b16 %v54
    %v169 = vunpack.c.l.b16 %v55
    %v170 = vunpack.c.h.b16 %v55
    %v171 = vunpack.c.l.b16 %v56
    %v172 = vunpack.c.h.b16 %v56
    %v173 = vunpack.c.l.b16 %v57
    %v174 = vunpack.c.h.b16 %v57
    %v175 = vunpack.c.l.b16 %v58
    %v176 = vunpack.c.h.b16 %v58
    %v177 = vunpack.c.l.b16 %v59
    %v178 = vunpack.c.h.b16 %v59
    %v179 = vunpack.c.l.b16 %v60
    %v180 = vunpack.c.h.b16 %v60
    %v181 = vunpack.c.l.b16 %v61
    %v182 = vunpack.c.h.b16 %v61
    %v183 = vunpack.c.l.b16 %v62
    %v184 = vunpack.c.h.b16 %v62
    %v185 = vunpack.c.l.b16 %v63
    %v186 = vunpack.c.h.b16 %v63
    %v187 = vunpack.c.l.b16 %v64
    %v188 = vunpack.c.h.b16 %v64
    %v189 = vunpack.c.l.b16 %v65
    %v190 = vunpack.c.h.b16 %v65
    %v191 = vunpack.c.l.b16 %v66
    %v192 = vunpack.c.h.b16 %v66
    %v193 = vunpack.c.l.b16 %v67
    %v194 = vunpack.c.h.b16 %v67
    %v195 = vunpack.c.l.b16 %v68
    %v196 = vunpack.c.h.b16 %v68
    %v197 = vunpack.c.l.b16 %v69
    %v198 = vunpack.c.h.b16 %v69
    %v199 = vunpack.c.l.b16 %v70
    %v200 = vunpack.c.h.b16 %v70
    %v201 = vunpack.c.l.b16 %v71
    %v202 = vunpack.c.h.b16 %v71
    %v203 = vunpack.c.l.b16 %v72
    %v204 = vunpack.c.h.b16 %v72
    %v205 = vunpack.c.l.b16 %v73
    %v206 = vunpack.c.h.b16 %v73
    %v207 = vpack.c.b16 %v145, %v143
    %v208 = vpack.c.b16 %v146, %v144
    %v209 = vpack.c.b16 %v149, %v147
    %v210 = vpack.c.b16 %v150, %v148
    %v211 = vpack.c.b16 %v153, %v151
    %v212 = vpack.c.b16 %v154, %v152
    %v213 = vpack.c.b16 %v157, %v155
    %v214 = vpack.c.b16 %v158, %v156
    %v215 = vpack.c.b16 %v161, %v159
    %v216 = vpack.c.b16 %v162, %v160
    %v217 = vpack.c.b16 %v165, %v163
    %v218 = vpack.c.b16 %v166, %v164
    %v219 = vpack.c.b16 %v169, %v167
    %v220 = vpack.c.b16 %v170, %v168
    %v221 = vpack.c.b16 %v173, %v171
    %v222 = vpack.c.b16 %v174, %v172
    %v223 = vpack.c.b16 %v177, %v175
    %v224 = vpack.c.b16 %v178, %v176
    %v225 = vpack.c.b16 %v181, %v179
    %v226 = vpack.c.b16 %v182, %v180
    %v227 = vpack.c.b16 %v185, %v183
    %v228 = vpack.c.b16 %v186, %v184
    %v229 = vpack.c.b16 %v189, %v187
    %v230 = vpack.c.b16 %v190, %v188
    %v231 = vpack.c.b16 %v193, %v191
    %v232 = vpack.c.b16 %v194, %v192
    %v233 = vpack.c.b16 %v197, %v195
    %v234 = vpack.c.b16 %v198, %v196
    %v235 = vpack.c.b16 %v201, %v199
    %v236 = vpack.c.b16 %v202, %v200
    %v237 = vpack.c.b16 %v205, %v203
    %v238 = vpack.c.b16 %v206, %v204
    %271 = vmatprep.subr.bf16.mxu0 %v208
    %272 = vmatpush1.bf16.msra.mxu0 %v207
    %273 = vmatprep.subr.bf16.mxu0 %v210
    %274 = vmatpush1.bf16.msra.mxu0 %v209
    %275 = vmatprep.subr.bf16.mxu0 %v212
    %276 = vmatpush1.bf16.msra.mxu0 %v211
    %277 = vmatprep.subr.bf16.mxu0 %v214
    %278 = vmatpush1.bf16.msra.mxu0 %v213
    %279 = vmatprep.subr.bf16.mxu0 %v216
    %280 = vmatpush1.bf16.msra.mxu0 %v215
    %281 = vmatprep.subr.bf16.mxu0 %v218
    %282 = vmatpush1.bf16.msra.mxu0 %v217
    %283 = vmatprep.subr.bf16.mxu0 %v220
    %284 = vmatpush1.bf16.msra.mxu0 %v219
    %285 = vmatprep.subr.bf16.mxu0 %v222
    %286 = vmatpush1.bf16.msra.mxu0 %v221
    %287 = vmatprep.subr.bf16.mxu0 %v224
    %288 = vmatpush1.bf16.msra.mxu0 %v223
    %289 = vmatprep.subr.bf16.mxu0 %v226
    %290 = vmatpush1.bf16.msra.mxu0 %v225
    %291 = vmatprep.subr.bf16.mxu0 %v228
    %292 = vmatpush1.bf16.msra.mxu0 %v227
    %293 = vmatprep.subr.bf16.mxu0 %v230
    %294 = vmatpush1.bf16.msra.mxu0 %v229
    %295 = vmatprep.subr.bf16.mxu0 %v232
    %296 = vmatpush1.bf16.msra.mxu0 %v231
    %297 = vmatprep.subr.bf16.mxu0 %v234
    %298 = vmatpush1.bf16.msra.mxu0 %v233
    %299 = vmatprep.subr.bf16.mxu0 %v236
    %300 = vmatpush1.bf16.msra.mxu0 %v235
    %301 = vmatprep.subr.bf16.mxu0 %v238
    %302 = vmatpush1.bf16.msra.mxu0 %v237
    %303 = vmatprep.mubr.bf16.mxu0 %v108
    %304 = vmatmul.mubr.bf16.gmra.mrb[0].mxu0 %v101
    %v305 = vpop.f32.mrb[0].mxu0
    %v306 = vadd.f32 %v79, %v305
    %v307 = vpop.f32.mrb[0].mxu0
    %v308 = vadd.f32 %v83, %v307
    %v309 = vpop.f32.mrb[0].mxu0
    %v310 = vpop.f32.mrb[0].mxu0
    %311 = vdwg.mxu0
    %v314 = vcombine.low %v306, %v308
    %v316 = vunpack.c.l.s4 1983009808
    %v317 = vunpack.c.0.s8 %v316
    %v318 = vlaneseq
    %v319 = vshrl.u32 %v318, 7
    %v320 = vsub.s32 %v317, %v319
    %v321 = vrot.slane %v314, %v320
    %323 = vst [vmem:[#allocation7] sm:$0xf] %v321
    // Predicated region
    $region22: #{tpu_custom_call.1} parent=1 // pred_check
      _
    $region23: #{tpu_custom_call.1} parent=1 // pred_check_branch
      %325 = sbr.rel (0) target = $region25
    $region24: #{tpu_custom_call.1} parent=1 // pred_region
      %s327 = ssub.s32 64, 64
      %328 = vsyncadd [#allocation4], %s327
      %s330 = sshll.u32 [#allocation7], 4
      %s331 = int_to_ptr.vmem [resolvable:$true] %s330
      %333 = dma.vmem_to_hbm [thread:$0]  %s331, 64, %s3, [#allocation4]
    $region25: #{tpu_custom_call.1} parent=1 // pred_fallthru
      _
    // Predicated region
    $region26: #{tpu_custom_call.1} parent=1 // pred_check
      _
    $region27: #{tpu_custom_call.1} parent=1 // pred_check_branch
      %335 = sbr.rel (0) target = $region29
    $region28: #{tpu_custom_call.1} parent=1 // pred_region
      %336 = dma.done [#allocation4], 64
    $region29: #{tpu_custom_call.1} parent=1 // pred_fallthru
      _
    %337 = vsyncpa [#allocation3], 1
    %338 = vsyncpa [#allocation6], 1
    %339 = vsyncpa [#allocation4], 1

</llo_original>
